<compile_context>
chip_gen: v5e
topology: v5e:2x2
jax: 0.10.0
libtpu: 0.0.40
codegen_flags: <defaults>
</compile_context>

<pallas_src>
import jax
import jax.numpy as jnp
import numpy as np
from jax.experimental import pallas as pl
from jax.experimental.pallas import tpu as pltpu

NODE_FEATURES = 64   # module default
EDGE_FEATURES = 32   # module default
BN_EPS = 1e-5


def cgcnn_conv_kernel(node_ref, edge_ref, src_ref, dst_ref, dst_t_ref,
                      w_node_ref, w_edge_ref,
                      gamma_m_ref, beta_m_ref,
                      gamma_n_ref, beta_n_ref,
                      out_ref):
    f32 = jnp.float32
    bf16 = jnp.bfloat16

    x = node_ref[...]                      # [N, F] f32
    e = edge_ref[...]                      # [E, Fe] f32
    N, F = x.shape
    E = e.shape[0]
    F2 = 2 * F

    # --- fused node linear: x @ [w_src | w_dst]  -> [N, 4F]  (256-wide MXU output) ---
    # Biases dropped: exactly cancelled by bn_message's mean subtraction.
    h_node = jnp.dot(x.astype(bf16), w_node_ref[...].astype(bf16),
                     preferred_element_type=f32)                        # [N, 4F]

    # Row-stack the two projections: B = [[x@w_src]; [x@w_dst]]  -> [2N, 2F]
    b_nodes = jnp.concatenate([h_node[:, :F2], h_node[:, F2:]],
                              axis=0).astype(bf16)                      # [2N, 2F]

    # --- fused per-edge gather (u_add_v) as ONE mask matmul ---------------------------
    # mask[e, j] = 1  iff  j == src[e]  or  j == N + dst[e]     (built on the VPU,
    # no transpose, no concatenation of the big [E, *] operand).
    col_iota = jax.lax.broadcasted_iota(jnp.int32, (E, 2 * N), 1)       # [E, 2N]
    gather = jnp.logical_or(col_iota == src_ref[...],
                            col_iota == (dst_ref[...] + N)).astype(bf16)  # [E, 2N]

    m = jnp.dot(gather, b_nodes, preferred_element_type=f32)            # [E, 2F]
    m = m + jnp.dot(e.astype(bf16), w_edge_ref[...].astype(bf16),
                    preferred_element_type=f32)                          # + edge linear

    # --- bn_message: batch statistics, one-pass variance ------------------------------
    mu_m = jnp.mean(m, axis=0, keepdims=True)
    var_m = jnp.maximum(jnp.mean(m * m, axis=0, keepdims=True) - mu_m * mu_m, 0.0)
    m = (m - mu_m) * jax.lax.rsqrt(var_m + BN_EPS) * gamma_m_ref[...] + beta_m_ref[...]

    # --- gated message: sigmoid(h_f) * softplus(h_s) -----------------------------------
    h_f = m[:, :F]
    h_s = m[:, F:]
    msg = jax.nn.sigmoid(h_f) * jax.nn.softplus(h_s)                     # [E, F]

    # --- scatter-sum to destination nodes: pre-transposed [N, E] mask ------------------
    row_iota = jax.lax.broadcasted_iota(jnp.int32, (N, E), 0)            # [N, E]
    scatter = (row_iota == dst_t_ref[...]).astype(bf16)                  # [N, E]
    h = jnp.dot(scatter, msg.astype(bf16), preferred_element_type=f32)   # [N, F]

    # --- bn: batch statistics over nodes, one-pass variance ----------------------------
    mu_n = jnp.mean(h, axis=0, keepdims=True)
    var_n = jnp.maximum(jnp.mean(h * h, axis=0, keepdims=True) - mu_n * mu_n, 0.0)
    h = (h - mu_n) * jax.lax.rsqrt(var_n + BN_EPS) * gamma_n_ref[...] + beta_n_ref[...]

    # --- residual + softplus -------------------------------------------------------------
    out_ref[...] = jax.nn.softplus(x + h)


def cgcnn_conv(node_feats, edge_feats, src, dst, params):
    """Pallas wrapper. node_feats [N,F], edge_feats [E,Fe], src/dst int32 [E]."""
    N, F = node_feats.shape
    E, Fe = edge_feats.shape
    F2 = 2 * F

    # Fuse linear_src / linear_dst weights into one [F, 4F] block (done once, outside).
    w_node = jnp.concatenate([params["w_src"], params["w_dst"]], axis=1)

    args = (
        node_feats.astype(jnp.float32),
        edge_feats.astype(jnp.float32),
        src.reshape(E, 1).astype(jnp.int32),
        dst.reshape(E, 1).astype(jnp.int32),
        dst.reshape(1, E).astype(jnp.int32),
        w_node.astype(jnp.float32),
        params["w_edge"].astype(jnp.float32),
        params["gamma_m"].reshape(1, F2).astype(jnp.float32),
        params["beta_m"].reshape(1, F2).astype(jnp.float32),
        params["gamma_n"].reshape(1, F).astype(jnp.float32),
        params["beta_n"].reshape(1, F).astype(jnp.float32),
    )

    vmem = lambda: pl.BlockSpec(memory_space=pltpu.MemorySpace.VMEM)

    flops = (2 * N * F * 4 * F            # fused node linear
             + 2 * E * (2 * N) * F2       # fused gather matmul
             + 2 * E * Fe * F2            # edge linear
             + 2 * N * E * F)             # scatter-sum
    transcendentals = 3 * E * F + 2 * N * F
    bytes_accessed = int(sum(int(np.prod(a.shape)) * a.dtype.itemsize for a in args)
                         + N * F * 4)

    return pl.pallas_call(
        cgcnn_conv_kernel,
        out_shape=jax.ShapeDtypeStruct((N, F), jnp.float32),
        in_specs=[vmem() for _ in args],
        out_specs=vmem(),
        compiler_params=pltpu.CompilerParams(
            vmem_limit_bytes=48 * 1024 * 1024),  # > v5e 16MiB default, < v7x 64MiB physical
        cost_estimate=pl.CostEstimate(flops=flops,
                                      transcendentals=transcendentals,
                                      bytes_accessed=bytes_accessed),
    )(*args)


def init_params(key, node_features=NODE_FEATURES, edge_features=EDGE_FEATURES):
    """Deterministic synthetic parameters (nn.Linear-style uniform init)."""
    k_src, k_dst, k_edge = jax.random.split(key, 3)

    def linear(k, fan_in, fan_out):
        kw, kb = jax.random.split(k)
        bound = 1.0 / np.sqrt(fan_in)
        w = jax.random.uniform(kw, (fan_in, fan_out), jnp.float32, -bound, bound)
        b = jax.random.uniform(kb, (fan_out,), jnp.float32, -bound, bound)
        return w, b

    w_src, b_src = linear(k_src, node_features, 2 * node_features)
    w_dst, b_dst = linear(k_dst, node_features, 2 * node_features)
    w_edge, b_edge = linear(k_edge, edge_features, 2 * node_features)
    return {
        "w_src": w_src, "b_src": b_src,
        "w_dst": w_dst, "b_dst": b_dst,
        "w_edge": w_edge, "b_edge": b_edge,
        # BatchNorm affine params, default torch init (gamma=1, beta=0)
        "gamma_m": jnp.ones((2 * node_features,), jnp.float32),
        "beta_m": jnp.zeros((2 * node_features,), jnp.float32),
        "gamma_n": jnp.ones((node_features,), jnp.float32),
        "beta_n": jnp.zeros((node_features,), jnp.float32),
    }


def cgcnn_conv_reference(node_feats, edge_feats, src, dst, params):
    """Plain-JAX reference mirroring the torch forward (train-mode BN), incl. biases."""
    hp = jax.lax.Precision.HIGHEST
    F = node_feats.shape[1]
    h_src = jnp.dot(node_feats, params["w_src"], precision=hp) + params["b_src"]
    h_dst = jnp.dot(node_feats, params["w_dst"], precision=hp) + params["b_dst"]
    h_edge = jnp.dot(edge_feats, params["w_edge"], precision=hp) + params["b_edge"]
    m = h_src[src] + h_dst[dst] + h_edge
    mu = m.mean(0, keepdims=True)
    var = ((m - mu) ** 2).mean(0, keepdims=True)
    m = (m - mu) * jax.lax.rsqrt(var + BN_EPS) * params["gamma_m"] + params["beta_m"]
    h_f, h_s = m[:, :F], m[:, F:]
    msg = jax.nn.sigmoid(h_f) * jax.nn.softplus(h_s)
    h = jax.ops.segment_sum(msg, dst, num_segments=node_feats.shape[0])
    mu = h.mean(0, keepdims=True)
    var = ((h - mu) ** 2).mean(0, keepdims=True)
    h = (h - mu) * jax.lax.rsqrt(var + BN_EPS) * params["gamma_n"] + params["beta_n"]
    return jax.nn.softplus(node_feats + h)


if __name__ == "__main__":
    key = jax.random.PRNGKey(0)
    k_param, k_node, k_edge, k_src, k_dst = jax.random.split(key, 5)

    N, E = 16, 32  # small graph: 16 nodes, 32 edges
    params = init_params(k_param)
    node_feats = jax.random.normal(k_node, (N, NODE_FEATURES), jnp.float32)
    edge_feats = jax.random.normal(k_edge, (E, EDGE_FEATURES), jnp.float32)
    src = jax.random.randint(k_src, (E,), 0, N, jnp.int32)
    dst = jax.random.randint(k_dst, (E,), 0, N, jnp.int32)

    out = cgcnn_conv(node_feats, edge_feats, src, dst, params)
    out = jax.block_until_ready(out)

    ref = cgcnn_conv_reference(node_feats, edge_feats, src, dst, params)
    np.testing.assert_allclose(np.asarray(out), np.asarray(ref), rtol=1e-2, atol=1e-2)

    print("KERNEL_OK")
</pallas_src>

<mosaic_0001>
module attributes {stable_mosaic.version = 11 : i64} {
  func.func @cgcnn_conv_kernel(%arg0: memref<16x64xf32, #tpu.memory_space<vmem>>, %arg1: memref<32x32xf32, #tpu.memory_space<vmem>>, %arg2: memref<32x1xi32, #tpu.memory_space<vmem>>, %arg3: memref<32x1xi32, #tpu.memory_space<vmem>>, %arg4: memref<1x32xi32, #tpu.memory_space<vmem>>, %arg5: memref<64x256xf32, #tpu.memory_space<vmem>>, %arg6: memref<32x128xf32, #tpu.memory_space<vmem>>, %arg7: memref<1x128xf32, #tpu.memory_space<vmem>>, %arg8: memref<1x128xf32, #tpu.memory_space<vmem>>, %arg9: memref<1x64xf32, #tpu.memory_space<vmem>>, %arg10: memref<1x64xf32, #tpu.memory_space<vmem>>, %arg11: memref<16x64xf32, #tpu.memory_space<vmem>>) attributes {dimension_semantics = [], scalar_prefetch = 0 : i64, scratch_operands = 0 : i64, tpu.core_type = #tpu.core_type<tc>} {
    %c0 = arith.constant 0 : index
    %c0_0 = arith.constant 0 : index
    %0 = vector.load %arg0[%c0, %c0_0] : memref<16x64xf32, #tpu.memory_space<vmem>>, vector<16x64xf32>
    %c0_1 = arith.constant 0 : index
    %c0_2 = arith.constant 0 : index
    %1 = vector.load %arg1[%c0_1, %c0_2] : memref<32x32xf32, #tpu.memory_space<vmem>>, vector<32x32xf32>
    %2 = arith.truncf %0 : vector<16x64xf32> to vector<16x64xbf16>
    %c0_3 = arith.constant 0 : index
    %c0_4 = arith.constant 0 : index
    %3 = vector.load %arg5[%c0_3, %c0_4] : memref<64x256xf32, #tpu.memory_space<vmem>>, vector<64x256xf32>
    %4 = arith.truncf %3 : vector<64x256xf32> to vector<64x256xbf16>
    %cst = arith.constant dense<0.000000e+00> : vector<16x256xf32>
    %5 = tpu.matmul %2, %4, %cst {dimension_numbers = #tpu.dot_dimension_numbers<[1], [0], [0], [1], [0, 0, 1, 1], [], []>} : vector<16x64xbf16>, vector<64x256xbf16>, vector<16x256xf32> -> vector<16x256xf32>
    %6 = vector.extract_strided_slice %5 {offsets = [0, 0], sizes = [16, 128], strides = [1, 1]} : vector<16x256xf32> to vector<16x128xf32>
    %7 = vector.extract_strided_slice %5 {offsets = [0, 128], sizes = [16, 128], strides = [1, 1]} : vector<16x256xf32> to vector<16x128xf32>
    %8 = tpu.concatenate %6, %7 in 0 : vector<16x128xf32>, vector<16x128xf32> -> vector<32x128xf32>
    %9 = arith.truncf %8 : vector<32x128xf32> to vector<32x128xbf16>
    %10 = tpu.iota {dimensions = array<i32: 1>} : vector<32x32xi32>
    %c0_5 = arith.constant 0 : index
    %c0_6 = arith.constant 0 : index
    %11 = vector.load %arg2[%c0_5, %c0_6] : memref<32x1xi32, #tpu.memory_space<vmem>>, vector<32x1xi32>
    %12 = vector.broadcast %11 : vector<32x1xi32> to vector<32x32xi32>
    %13 = arith.cmpi eq, %10, %12 : vector<32x32xi32>
    %c0_7 = arith.constant 0 : index
    %c0_8 = arith.constant 0 : index
    %14 = vector.load %arg3[%c0_7, %c0_8] : memref<32x1xi32, #tpu.memory_space<vmem>>, vector<32x1xi32>
    %c16_i32 = arith.constant 16 : i32
    %15 = vector.broadcast %c16_i32 : i32 to vector<32x1xi32>
    %16 = arith.addi %14, %15 : vector<32x1xi32>
    %17 = vector.broadcast %16 : vector<32x1xi32> to vector<32x32xi32>
    %18 = arith.cmpi eq, %10, %17 : vector<32x32xi32>
    %19 = arith.ori %13, %18 : vector<32x32xi1>
    %20 = arith.extui %19 : vector<32x32xi1> to vector<32x32xi32>
    %21 = arith.sitofp %20 : vector<32x32xi32> to vector<32x32xf32>
    %22 = arith.truncf %21 : vector<32x32xf32> to vector<32x32xbf16>
    %cst_9 = arith.constant dense<0.000000e+00> : vector<32x128xf32>
    %23 = tpu.matmul %22, %9, %cst_9 {dimension_numbers = #tpu.dot_dimension_numbers<[1], [0], [0], [1], [0, 0, 1, 1], [], []>} : vector<32x32xbf16>, vector<32x128xbf16>, vector<32x128xf32> -> vector<32x128xf32>
    %24 = arith.truncf %1 : vector<32x32xf32> to vector<32x32xbf16>
    %c0_10 = arith.constant 0 : index
    %c0_11 = arith.constant 0 : index
    %25 = vector.load %arg6[%c0_10, %c0_11] : memref<32x128xf32, #tpu.memory_space<vmem>>, vector<32x128xf32>
    %26 = arith.truncf %25 : vector<32x128xf32> to vector<32x128xbf16>
    %cst_12 = arith.constant dense<0.000000e+00> : vector<32x128xf32>
    %27 = tpu.matmul %24, %26, %cst_12 {dimension_numbers = #tpu.dot_dimension_numbers<[1], [0], [0], [1], [0, 0, 1, 1], [], []>} : vector<32x32xbf16>, vector<32x128xbf16>, vector<32x128xf32> -> vector<32x128xf32>
    %28 = arith.addf %23, %27 : vector<32x128xf32>
    %cst_13 = arith.constant dense<0.000000e+00> : vector<128xf32>
    %29 = vector.multi_reduction <add>, %28, %cst_13 [0] : vector<32x128xf32> to vector<128xf32>
    %30 = vector.shape_cast %29 : vector<128xf32> to vector<1x128xf32>
    %cst_14 = arith.constant 3.200000e+01 : f32
    %31 = vector.broadcast %cst_14 : f32 to vector<1x128xf32>
    %32 = arith.divf %30, %31 : vector<1x128xf32>
    %33 = arith.mulf %28, %28 : vector<32x128xf32>
    %cst_15 = arith.constant dense<0.000000e+00> : vector<128xf32>
    %34 = vector.multi_reduction <add>, %33, %cst_15 [0] : vector<32x128xf32> to vector<128xf32>
    %35 = vector.shape_cast %34 : vector<128xf32> to vector<1x128xf32>
    %cst_16 = arith.constant 3.200000e+01 : f32
    %36 = vector.broadcast %cst_16 : f32 to vector<1x128xf32>
    %37 = arith.divf %35, %36 : vector<1x128xf32>
    %38 = arith.mulf %32, %32 : vector<1x128xf32>
    %39 = arith.subf %37, %38 : vector<1x128xf32>
    %cst_17 = arith.constant 0.000000e+00 : f32
    %40 = vector.broadcast %cst_17 : f32 to vector<1x128xf32>
    %41 = arith.maximumf %39, %40 : vector<1x128xf32>
    %42 = vector.broadcast %32 : vector<1x128xf32> to vector<32x128xf32>
    %43 = arith.subf %28, %42 : vector<32x128xf32>
    %cst_18 = arith.constant 9.99999974E-6 : f32
    %44 = vector.broadcast %cst_18 : f32 to vector<1x128xf32>
    %45 = arith.addf %41, %44 : vector<1x128xf32>
    %46 = math.rsqrt %45 : vector<1x128xf32>
    %47 = vector.broadcast %46 : vector<1x128xf32> to vector<32x128xf32>
    %48 = arith.mulf %43, %47 : vector<32x128xf32>
    %c0_19 = arith.constant 0 : index
    %c0_20 = arith.constant 0 : index
    %49 = vector.load %arg7[%c0_19, %c0_20] : memref<1x128xf32, #tpu.memory_space<vmem>>, vector<1x128xf32>
    %50 = vector.broadcast %49 : vector<1x128xf32> to vector<32x128xf32>
    %51 = arith.mulf %48, %50 : vector<32x128xf32>
    %c0_21 = arith.constant 0 : index
    %c0_22 = arith.constant 0 : index
    %52 = vector.load %arg8[%c0_21, %c0_22] : memref<1x128xf32, #tpu.memory_space<vmem>>, vector<1x128xf32>
    %53 = vector.broadcast %52 : vector<1x128xf32> to vector<32x128xf32>
    %54 = arith.addf %51, %53 : vector<32x128xf32>
    %55 = vector.extract_strided_slice %54 {offsets = [0, 0], sizes = [32, 64], strides = [1, 1]} : vector<32x128xf32> to vector<32x64xf32>
    %56 = vector.extract_strided_slice %54 {offsets = [0, 64], sizes = [32, 64], strides = [1, 1]} : vector<32x128xf32> to vector<32x64xf32>
    %57 = arith.negf %55 : vector<32x64xf32>
    %58 = math.exp %57 : vector<32x64xf32>
    %cst_23 = arith.constant 1.000000e+00 : f32
    %59 = vector.broadcast %cst_23 : f32 to vector<32x64xf32>
    %60 = arith.addf %59, %58 : vector<32x64xf32>
    %61 = arith.divf %59, %60 : vector<32x64xf32>
    %cst_24 = arith.constant 0.000000e+00 : f32
    %62 = vector.broadcast %cst_24 : f32 to vector<32x64xf32>
    %63 = arith.maximumf %56, %62 : vector<32x64xf32>
    %64 = vector.broadcast %cst_24 : f32 to vector<32x64xf32>
    %65 = arith.subf %56, %64 : vector<32x64xf32>
    %66 = arith.cmpf one, %65, %65 : vector<32x64xf32>
    %67 = vector.broadcast %cst_24 : f32 to vector<32x64xf32>
    %68 = arith.addf %56, %67 : vector<32x64xf32>
    %69 = math.absf %65 : vector<32x64xf32>
    %cst_25 = arith.constant 0.000000e+00 : f32
    %70 = vector.broadcast %cst_25 : f32 to vector<32x64xf32>
    %71 = arith.subf %70, %69 : vector<32x64xf32>
    %72 = math.exp %71 : vector<32x64xf32>
    %73 = math.log1p %72 : vector<32x64xf32>
    %74 = arith.addf %63, %73 : vector<32x64xf32>
    %75 = arith.select %66, %68, %74 : vector<32x64xi1>, vector<32x64xf32>
    %76 = arith.mulf %61, %75 : vector<32x64xf32>
    %77 = tpu.iota {dimensions = array<i32: 0>} : vector<16x32xi32>
    %c0_26 = arith.constant 0 : index
    %c0_27 = arith.constant 0 : index
    %78 = vector.load %arg4[%c0_26, %c0_27] : memref<1x32xi32, #tpu.memory_space<vmem>>, vector<1x32xi32>
    %79 = vector.broadcast %78 : vector<1x32xi32> to vector<16x32xi32>
    %80 = arith.cmpi eq, %77, %79 : vector<16x32xi32>
    %81 = arith.extui %80 : vector<16x32xi1> to vector<16x32xi32>
    %82 = arith.sitofp %81 : vector<16x32xi32> to vector<16x32xf32>
    %83 = arith.truncf %82 : vector<16x32xf32> to vector<16x32xbf16>
    %84 = arith.truncf %76 : vector<32x64xf32> to vector<32x64xbf16>
    %cst_28 = arith.constant dense<0.000000e+00> : vector<16x64xf32>
    %85 = tpu.matmul %83, %84, %cst_28 {dimension_numbers = #tpu.dot_dimension_numbers<[1], [0], [0], [1], [0, 0, 1, 1], [], []>} : vector<16x32xbf16>, vector<32x64xbf16>, vector<16x64xf32> -> vector<16x64xf32>
    %cst_29 = arith.constant dense<0.000000e+00> : vector<64xf32>
    %86 = vector.multi_reduction <add>, %85, %cst_29 [0] : vector<16x64xf32> to vector<64xf32>
    %87 = vector.shape_cast %86 : vector<64xf32> to vector<1x64xf32>
    %cst_30 = arith.constant 1.600000e+01 : f32
    %88 = vector.broadcast %cst_30 : f32 to vector<1x64xf32>
    %89 = arith.divf %87, %88 : vector<1x64xf32>
    %90 = arith.mulf %85, %85 : vector<16x64xf32>
    %cst_31 = arith.constant dense<0.000000e+00> : vector<64xf32>
    %91 = vector.multi_reduction <add>, %90, %cst_31 [0] : vector<16x64xf32> to vector<64xf32>
    %92 = vector.shape_cast %91 : vector<64xf32> to vector<1x64xf32>
    %cst_32 = arith.constant 1.600000e+01 : f32
    %93 = vector.broadcast %cst_32 : f32 to vector<1x64xf32>
    %94 = arith.divf %92, %93 : vector<1x64xf32>
    %95 = arith.mulf %89, %89 : vector<1x64xf32>
    %96 = arith.subf %94, %95 : vector<1x64xf32>
    %cst_33 = arith.constant 0.000000e+00 : f32
    %97 = vector.broadcast %cst_33 : f32 to vector<1x64xf32>
    %98 = arith.maximumf %96, %97 : vector<1x64xf32>
    %99 = vector.broadcast %89 : vector<1x64xf32> to vector<16x64xf32>
    %100 = arith.subf %85, %99 : vector<16x64xf32>
    %cst_34 = arith.constant 9.99999974E-6 : f32
    %101 = vector.broadcast %cst_34 : f32 to vector<1x64xf32>
    %102 = arith.addf %98, %101 : vector<1x64xf32>
    %103 = math.rsqrt %102 : vector<1x64xf32>
    %104 = vector.broadcast %103 : vector<1x64xf32> to vector<16x64xf32>
    %105 = arith.mulf %100, %104 : vector<16x64xf32>
    %c0_35 = arith.constant 0 : index
    %c0_36 = arith.constant 0 : index
    %106 = vector.load %arg9[%c0_35, %c0_36] : memref<1x64xf32, #tpu.memory_space<vmem>>, vector<1x64xf32>
    %107 = vector.broadcast %106 : vector<1x64xf32> to vector<16x64xf32>
    %108 = arith.mulf %105, %107 : vector<16x64xf32>
    %c0_37 = arith.constant 0 : index
    %c0_38 = arith.constant 0 : index
    %109 = vector.load %arg10[%c0_37, %c0_38] : memref<1x64xf32, #tpu.memory_space<vmem>>, vector<1x64xf32>
    %110 = vector.broadcast %109 : vector<1x64xf32> to vector<16x64xf32>
    %111 = arith.addf %108, %110 : vector<16x64xf32>
    %112 = arith.addf %0, %111 : vector<16x64xf32>
    %cst_39 = arith.constant 0.000000e+00 : f32
    %113 = vector.broadcast %cst_39 : f32 to vector<16x64xf32>
    %114 = arith.maximumf %112, %113 : vector<16x64xf32>
    %115 = vector.broadcast %cst_39 : f32 to vector<16x64xf32>
    %116 = arith.subf %112, %115 : vector<16x64xf32>
    %117 = arith.cmpf one, %116, %116 : vector<16x64xf32>
    %118 = vector.broadcast %cst_39 : f32 to vector<16x64xf32>
    %119 = arith.addf %112, %118 : vector<16x64xf32>
    %120 = math.absf %116 : vector<16x64xf32>
    %cst_40 = arith.constant 0.000000e+00 : f32
    %121 = vector.broadcast %cst_40 : f32 to vector<16x64xf32>
    %122 = arith.subf %121, %120 : vector<16x64xf32>
    %123 = math.exp %122 : vector<16x64xf32>
    %124 = math.log1p %123 : vector<16x64xf32>
    %125 = arith.addf %114, %124 : vector<16x64xf32>
    %126 = arith.select %117, %119, %125 : vector<16x64xi1>, vector<16x64xf32>
    %c0_41 = arith.constant 0 : index
    %c0_42 = arith.constant 0 : index
    %127 = vector.load %arg11[%c0_41, %c0_42] : memref<16x64xf32, #tpu.memory_space<vmem>>, vector<16x64xf32>
    tpu.vector_store %arg11[%c0_41, %c0_42], %126 {strides = array<i32>} : memref<16x64xf32, #tpu.memory_space<vmem>>, vector<16x64xf32>,
    return
  }
}

</mosaic_0001>

<llo_original>
// kernel: tpu_custom_call.1
$region0: #{tpu_custom_call.1}
  #allocation0 [shape = 'u32[]', space=smem, size = 0x4, offset = 0x4, fixed_abs, tag = 'smem constant byte address 0x4 - core index']
  #allocation1 [shape = 'u32[72,128]{1,0:T(1,128)}', space=vmem, size = 0x9000, scoped, tag = 'internal scratch']
  %s0 = inlined_call_operand.hbm [shape: f32[16,64], index: 0, kind: input, shape index: {}]
  %s1 = inlined_call_operand.vmem [shape: f32[32,32], index: 1, kind: input, shape index: {}]
  %s2 = inlined_call_operand.vmem [shape: s32[32,1], index: 2, kind: input, shape index: {}]
  %s3 = inlined_call_operand.vmem [shape: s32[32,1], index: 3, kind: input, shape index: {}]
  %s4 = inlined_call_operand.vmem [shape: s32[1,32], index: 4, kind: input, shape index: {}]
  %s5 = inlined_call_operand.hbm [shape: f32[64,256], index: 5, kind: input, shape index: {}]
  %s6 = inlined_call_operand.vmem [shape: f32[32,128], index: 6, kind: input, shape index: {}]
  %s7 = inlined_call_operand.vmem [shape: f32[1,128], index: 7, kind: input, shape index: {}]
  %s8 = inlined_call_operand.vmem [shape: f32[1,128], index: 8, kind: input, shape index: {}]
  %s9 = inlined_call_operand.vmem [shape: f32[1,64], index: 9, kind: input, shape index: {}]
  %s10 = inlined_call_operand.vmem [shape: f32[1,64], index: 10, kind: input, shape index: {}]
  %s11 = inlined_call_operand.hbm [shape: f32[16,64], index: 11, kind: output, shape index: {}]
  %s12 = sld [smem:[#allocation0]]
  $region62: #{tpu_custom_call.1} parent=0
    _
  %s14 = ssub.s32 1, %s12
  %s15 = scalar_select 0, %s14, %s12
  $region1: #{tpu_custom_call.1} parent=0
    #allocation2 [shape = 'u8[8192]{0}', space=vmem, size = 0x2000, scoped, tag = 'input window, operand 0, single buffered']
    #allocation3 [shape = 's32[1]{0}', space=sflag, size = 0x4, scoped, tag = 'scoped memory for tpu_custom_call.1']
    #allocation4 [shape = 's32[1]{0}', space=sflag, size = 0x4, scoped, tag = 'scoped memory for tpu_custom_call.1']
    #allocation5 [shape = 'u8[65536]{0}', space=vmem, size = 0x10000, scoped, tag = 'input window, operand 5, single buffered']
    #allocation6 [shape = 's32[1]{0}', space=sflag, size = 0x4, scoped, tag = 'scoped memory for tpu_custom_call.1']
    #allocation7 [shape = 'u8[8192]{0}', space=vmem, size = 0x2000, scoped, tag = 'output window, operand 0, single buffered']
    %16 = vsyncpa [#allocation3], 0
    %17 = vsyncpa [#allocation6], 0
    %18 = vsyncpa [#allocation4], 0
    // Predicated region
    $region2: #{tpu_custom_call.1} parent=1 // pred_check
      _
    $region3: #{tpu_custom_call.1} parent=1 // pred_check_branch
      %20 = sbr.rel (0) target = $region5
    $region4: #{tpu_custom_call.1} parent=1 // pred_region
      %22 = vsyncadd [#allocation3], 0
      %s23 = sshll.u32 %s0, 4
      %s24 = int_to_ptr.hbm [resolvable:$true] %s23
      %s25 = sshll.u32 [#allocation2], 4
      %s26 = int_to_ptr.vmem [resolvable:$true] %s25
      %31 = dma.hbm_to_vmem [thread:$0]  %s24, 256, %s26, [#allocation3], 128, 128, 8
    $region5: #{tpu_custom_call.1} parent=1 // pred_fallthru
      _
    // Predicated region
    $region6: #{tpu_custom_call.1} parent=1 // pred_check
      _
    $region7: #{tpu_custom_call.1} parent=1 // pred_check_branch
      %33 = sbr.rel (0) target = $region9
    $region8: #{tpu_custom_call.1} parent=1 // pred_region
      _
    $region9: #{tpu_custom_call.1} parent=1 // pred_fallthru
      _
    // Predicated region
    $region10: #{tpu_custom_call.1} parent=1 // pred_check
      _
    $region11: #{tpu_custom_call.1} parent=1 // pred_check_branch
      %35 = sbr.rel (0) target = $region13
    $region12: #{tpu_custom_call.1} parent=1 // pred_region
      _
    $region13: #{tpu_custom_call.1} parent=1 // pred_fallthru
      _
    // Predicated region
    $region14: #{tpu_custom_call.1} parent=1 // pred_check
      _
    $region15: #{tpu_custom_call.1} parent=1 // pred_check_branch
      %37 = sbr.rel (0) target = $region17
    $region16: #{tpu_custom_call.1} parent=1 // pred_region
      _
    $region17: #{tpu_custom_call.1} parent=1 // pred_fallthru
      _
    // Predicated region
    $region18: #{tpu_custom_call.1} parent=1 // pred_check
      _
    $region19: #{tpu_custom_call.1} parent=1 // pred_check_branch
      %39 = sbr.rel (0) target = $region21
    $region20: #{tpu_custom_call.1} parent=1 // pred_region
      _
    $region21: #{tpu_custom_call.1} parent=1 // pred_fallthru
      _
    // Predicated region
    $region22: #{tpu_custom_call.1} parent=1 // pred_check
      _
    $region23: #{tpu_custom_call.1} parent=1 // pred_check_branch
      %41 = sbr.rel (0) target = $region25
    $region24: #{tpu_custom_call.1} parent=1 // pred_region
      %43 = vsyncadd [#allocation6], 0
      %s44 = sshll.u32 %s5, 4
      %s45 = int_to_ptr.hbm [resolvable:$true] %s44
      %s46 = sshll.u32 [#allocation5], 4
      %s47 = int_to_ptr.vmem [resolvable:$true] %s46
      %52 = dma.hbm_to_vmem [thread:$0]  %s45, 2048, %s47, [#allocation6], 256, 256, 16
    $region25: #{tpu_custom_call.1} parent=1 // pred_fallthru
      _
    // Predicated region
    $region26: #{tpu_custom_call.1} parent=1 // pred_check
      _
    $region27: #{tpu_custom_call.1} parent=1 // pred_check_branch
      %54 = sbr.rel (0) target = $region29
    $region28: #{tpu_custom_call.1} parent=1 // pred_region
      _
    $region29: #{tpu_custom_call.1} parent=1 // pred_fallthru
      _
    // Predicated region
    $region30: #{tpu_custom_call.1} parent=1 // pred_check
      _
    $region31: #{tpu_custom_call.1} parent=1 // pred_check_branch
      %56 = sbr.rel (0) target = $region33
    $region32: #{tpu_custom_call.1} parent=1 // pred_region
      _
    $region33: #{tpu_custom_call.1} parent=1 // pred_fallthru
      _
    // Predicated region
    $region34: #{tpu_custom_call.1} parent=1 // pred_check
      _
    $region35: #{tpu_custom_call.1} parent=1 // pred_check_branch
      %58 = sbr.rel (0) target = $region37
    $region36: #{tpu_custom_call.1} parent=1 // pred_region
      _
    $region37: #{tpu_custom_call.1} parent=1 // pred_fallthru
      _
    // Predicated region
    $region38: #{tpu_custom_call.1} parent=1 // pred_check
      _
    $region39: #{tpu_custom_call.1} parent=1 // pred_check_branch
      %60 = sbr.rel (0) target = $region41
    $region40: #{tpu_custom_call.1} parent=1 // pred_region
      _
    $region41: #{tpu_custom_call.1} parent=1 // pred_fallthru
      _
    // Predicated region
    $region42: #{tpu_custom_call.1} parent=1 // pred_check
      _
    $region43: #{tpu_custom_call.1} parent=1 // pred_check_branch
      %62 = sbr.rel (0) target = $region45
    $region44: #{tpu_custom_call.1} parent=1 // pred_region
      _
    $region45: #{tpu_custom_call.1} parent=1 // pred_fallthru
      _
    // Predicated region
    $region46: #{tpu_custom_call.1} parent=1 // pred_check
      _
    $region47: #{tpu_custom_call.1} parent=1 // pred_check_branch
      %64 = sbr.rel (0) target = $region49
    $region48: #{tpu_custom_call.1} parent=1 // pred_region
      %66 = dma.done [#allocation3], 256
    $region49: #{tpu_custom_call.1} parent=1 // pred_fallthru
      _
    // Predicated region
    $region50: #{tpu_custom_call.1} parent=1 // pred_check
      _
    $region51: #{tpu_custom_call.1} parent=1 // pred_check_branch
      %68 = sbr.rel (0) target = $region53
    $region52: #{tpu_custom_call.1} parent=1 // pred_region
      %70 = dma.done [#allocation6], 2048
    $region53: #{tpu_custom_call.1} parent=1 // pred_fallthru
      _
    %v72 = vld [vmem:[#allocation2] sm:$0xff]
    %v73 = vld [vmem:[#allocation2 + $0x8] sm:$0xff]
    %v74 = vld [vmem:[%s1] sm:$0xff]
    %v75 = vld [vmem:[%s1 + $0x8] sm:$0xff]
    %v76 = vld [vmem:[%s1 + $0x10] sm:$0xff]
    %v77 = vld [vmem:[%s1 + $0x18] sm:$0xff]
    %v78 = vpack.c.bf16 %v73, %v72
    %v79 = vld [vmem:[#allocation5] sm:$0xff]
    %v80 = vld [vmem:[#allocation5 + $0x8] sm:$0xff]
    %v81 = vld [vmem:[#allocation5 + $0x10] sm:$0xff]
    %v82 = vld [vmem:[#allocation5 + $0x18] sm:$0xff]
    %v83 = vld [vmem:[#allocation5 + $0x20] sm:$0xff]
    %v84 = vld [vmem:[#allocation5 + $0x28] sm:$0xff]
    %v85 = vld [vmem:[#allocation5 + $0x30] sm:$0xff]
    %v86 = vld [vmem:[#allocation5 + $0x38] sm:$0xff]
    %v87 = vld [vmem:[#allocation5 + $0x40] sm:$0xff]
    %v88 = vld [vmem:[#allocation5 + $0x48] sm:$0xff]
    %v89 = vld [vmem:[#allocation5 + $0x50] sm:$0xff]
    %v90 = vld [vmem:[#allocation5 + $0x58] sm:$0xff]
    %v91 = vld [vmem:[#allocation5 + $0x60] sm:$0xff]
    %v92 = vld [vmem:[#allocation5 + $0x68] sm:$0xff]
    %v93 = vld [vmem:[#allocation5 + $0x70] sm:$0xff]
    %v94 = vld [vmem:[#allocation5 + $0x78] sm:$0xff]
    %v95 = vpack.c.bf16 %v81, %v79
    %v96 = vpack.c.bf16 %v82, %v80
    %v97 = vpack.c.bf16 %v85, %v83
    %v98 = vpack.c.bf16 %v86, %v84
    %v99 = vpack.c.bf16 %v89, %v87
    %v100 = vpack.c.bf16 %v90, %v88
    %v101 = vpack.c.bf16 %v93, %v91
    %v102 = vpack.c.bf16 %v94, %v92
    %vm103 = vcmask 523264
    %v105 = vsel %vm103, %v78, 0
    %107 = vmatpush.bf16.msra.mxu0 0
    %108 = vmatpush.bf16.msra.mxu0 0
    %109 = vmatpush.bf16.msra.mxu0 0
    %110 = vmatpush.bf16.msra.mxu0 0
    %111 = vmatpush.bf16.msra.mxu0 %v101
    %112 = vmatpush.bf16.msra.mxu0 %v99
    %113 = vmatpush.bf16.msra.mxu0 %v97
    %114 = vmatpush.bf16.msra.mxu0 %v95
    %115 = vmatmul.bf16.gmra.mxu0 %v105
    %v116 = vpop.f32.mrf.mxu0
    %v117 = vadd.f32 0.0, %v116
    %v118 = vpop.f32.mrf.mxu0
    %v119 = vadd.f32 0.0, %v118
    %120 = vdwg.mxu0
    %121 = vmatpush.bf16.msra.mxu0 0
    %122 = vmatpush.bf16.msra.mxu0 0
    %123 = vmatpush.bf16.msra.mxu0 0
    %124 = vmatpush.bf16.msra.mxu0 0
    %125 = vmatpush.bf16.msra.mxu0 %v102
    %126 = vmatpush.bf16.msra.mxu0 %v100
    %127 = vmatpush.bf16.msra.mxu0 %v98
    %128 = vmatpush.bf16.msra.mxu0 %v96
    %129 = vmatmul.bf16.gmra.mxu0 %v105
    %v130 = vpop.f32.mrf.mxu0
    %v131 = vadd.f32 0.0, %v130
    %v132 = vpop.f32.mrf.mxu0
    %v133 = vadd.f32 0.0, %v132
    %134 = vdwg.mxu0
    %v135 = vpack.c.bf16 %v119, %v117
    %v136 = vpack.c.bf16 %v133, %v131
    %v137 = vlaneseq
    %v138 = vand.u32 %v137, 127
    %v139 = vld [vmem:[%s2] sm:$0xff]
    %v140 = vld [vmem:[%s2 + $0x8] sm:$0xff]
    %v141 = vld [vmem:[%s2 + $0x10] sm:$0xff]
    %v142 = vld [vmem:[%s2 + $0x18] sm:$0xff]
    %143 = vset.pattern.permute.xlu0 0
    %144 = vperm.xlu0 %143, %v139
    %v145 = vpop.permute.xlu0 %144
    %146 = vset.pattern.permute.xlu0 0
    %147 = vperm.xlu0 %146, %v140
    %v148 = vpop.permute.xlu0 %147
    %149 = vset.pattern.permute.xlu0 0
    %150 = vperm.xlu0 %149, %v141
    %v151 = vpop.permute.xlu0 %150
    %152 = vset.pattern.permute.xlu0 0
    %153 = vperm.xlu0 %152, %v142
    %v154 = vpop.permute.xlu0 %153
    %vm155 = vcmp.eq.s32.totalorder %v138, %v145
    %vm156 = vcmp.eq.s32.totalorder %v138, %v148
    %vm157 = vcmp.eq.s32.totalorder %v138, %v151
    %vm158 = vcmp.eq.s32.totalorder %v138, %v154
    %v159 = vld [vmem:[%s3] sm:$0xff]
    %v160 = vld [vmem:[%s3 + $0x8] sm:$0xff]
    %v161 = vld [vmem:[%s3 + $0x10] sm:$0xff]
    %v162 = vld [vmem:[%s3 + $0x18] sm:$0xff]
    %v163 = vadd.s32 %v159, 16
    %v164 = vadd.s32 %v160, 16
    %v165 = vadd.s32 %v161, 16
    %v166 = vadd.s32 %v162, 16
    %167 = vset.pattern.permute.xlu0 0
    %168 = vperm.xlu0 %167, %v163
    %v169 = vpop.permute.xlu0 %168
    %170 = vset.pattern.permute.xlu0 0
    %171 = vperm.xlu0 %170, %v164
    %v172 = vpop.permute.xlu0 %171
    %173 = vset.pattern.permute.xlu0 0
    %174 = vperm.xlu0 %173, %v165
    %v175 = vpop.permute.xlu0 %174
    %176 = vset.pattern.permute.xlu0 0
    %177 = vperm.xlu0 %176, %v166
    %v178 = vpop.permute.xlu0 %177
    %vm179 = vcmp.eq.s32.totalorder %v138, %v169
    %vm180 = vcmp.eq.s32.totalorder %v138, %v172
    %vm181 = vcmp.eq.s32.totalorder %v138, %v175
    %vm182 = vcmp.eq.s32.totalorder %v138, %v178
    %vm183 = vmor %vm155, %vm179
    %vm184 = vmor %vm156, %vm180
    %vm185 = vmor %vm157, %vm181
    %vm186 = vmor %vm158, %vm182
    %v187 = vsel %vm183, 1, 0
    %v188 = vsel %vm184, 1, 0
    %v189 = vsel %vm185, 1, 0
    %v190 = vsel %vm186, 1, 0
    %v191 = vcvt.s32.f32 %v187
    %v192 = vcvt.s32.f32 %v188
    %v193 = vcvt.s32.f32 %v189
    %v194 = vcvt.s32.f32 %v190
    %v195 = vpack.c.bf16 %v192, %v191
    %v196 = vpack.c.bf16 %v194, %v193
    %v197 = vpack.c.bf16 %v75, %v74
    %v198 = vpack.c.bf16 %v77, %v76
    %v199 = vld [vmem:[%s6] sm:$0xff]
    %v200 = vld [vmem:[%s6 + $0x8] sm:$0xff]
    %v201 = vld [vmem:[%s6 + $0x10] sm:$0xff]
    %v202 = vld [vmem:[%s6 + $0x18] sm:$0xff]
    %v203 = vpack.c.bf16 %v200, %v199
    %v204 = vpack.c.bf16 %v202, %v201
    %vm205 = vcmask 261120
    %v207 = vsel %vm205, %v197, 0
    %v210 = vsel %vm205, %v198, 0
    %212 = vmatpush.bf16.msra.mxu0 0
    %213 = vmatpush.bf16.msra.mxu0 0
    %214 = vmatpush.bf16.msra.mxu0 0
    %215 = vmatpush.bf16.msra.mxu0 0
    %216 = vmatpush.bf16.msra.mxu0 0
    %217 = vmatpush.bf16.msra.mxu0 0
    %218 = vmatpush.bf16.msra.mxu0 %v204
    %219 = vmatpush.bf16.msra.mxu0 %v203
    %220 = vmatmul.bf16.gmra.mxu0 %v207
    %v221 = vpop.f32.mrf.mxu0
    %v222 = vadd.f32 0.0, %v221
    %v223 = vpop.f32.mrf.mxu0
    %v224 = vadd.f32 0.0, %v223
    %225 = vmatmul.bf16.gmra.mxu0 %v210
    %v226 = vpop.f32.mrf.mxu0
    %v227 = vadd.f32 0.0, %v226
    %v228 = vpop.f32.mrf.mxu0
    %v229 = vadd.f32 0.0, %v228
    %230 = vdwg.mxu0
    %v232 = vsel %vm205, %v195, 0
    %v235 = vsel %vm205, %v196, 0
    %237 = vmatpush.bf16.msra.mxu0 0
    %238 = vmatpush.bf16.msra.mxu0 0
    %239 = vmatpush.bf16.msra.mxu0 0
    %240 = vmatpush.bf16.msra.mxu0 0
    %241 = vmatpush.bf16.msra.mxu0 0
    %242 = vmatpush.bf16.msra.mxu0 0
    %243 = vmatpush.bf16.msra.mxu0 %v136
    %244 = vmatpush.bf16.msra.mxu0 %v135
    %245 = vmatmul.bf16.gmra.mxu0 %v232
    %v246 = vpop.f32.mrf.mxu0
    %v247 = vadd.f32 %v222, %v246
    %v248 = vpop.f32.mrf.mxu0
    %v249 = vadd.f32 %v224, %v248
    %250 = vmatmul.bf16.gmra.mxu0 %v235
    %v251 = vpop.f32.mrf.mxu0
    %v252 = vadd.f32 %v227, %v251
    %v253 = vpop.f32.mrf.mxu0
    %v254 = vadd.f32 %v229, %v253
    %255 = vdwg.mxu0
    %v256 = vadd.f32 %v247, %v249
    %v257 = vadd.f32 %v256, %v252
    %v258 = vadd.f32 %v257, %v254
    %v259 = vrot.slane %v258, 4
    %v260 = vadd.f32 %v258, %v259
    %v261 = vrot.slane %v260, 2
    %v262 = vadd.f32 %v260, %v261
    %v263 = vrot.slane %v262, 1
    %v264 = vadd.f32 %v262, %v263
    %v265 = vrcp.pop 32.0
    %v266 = vmul.f32 32.0, %v265
    %v267 = vsub.f32 1.0, %v266
    %v268 = vmul.f32 %v265, %v267
    %v269 = vadd.f32 %v265, %v268
    %vm270 = vweird.f32 %v265
    %v271 = vsel %vm270, %v265, %v269
    %v272 = vmul.f32 %v264, %v271
    %v273 = vmul.f32 %v247, %v247
    %v274 = vmul.f32 %v249, %v249
    %v275 = vmul.f32 %v252, %v252
    %v276 = vmul.f32 %v254, %v254
    %v277 = vadd.f32 %v273, %v274
    %v278 = vadd.f32 %v277, %v275
    %v279 = vadd.f32 %v278, %v276
    %v280 = vrot.slane %v279, 4
    %v281 = vadd.f32 %v279, %v280
    %v282 = vrot.slane %v281, 2
    %v283 = vadd.f32 %v281, %v282
    %v284 = vrot.slane %v283, 1
    %v285 = vadd.f32 %v283, %v284
    %v286 = vmul.f32 %v285, %v271
    %v287 = vmul.f32 %v272, %v272
    %v288 = vsub.f32 %v286, %v287
    %v289 = vmax.f32 %v288, 0.0
    %v290 = vsub.f32 %v247, %v272
    %v291 = vsub.f32 %v249, %v272
    %v292 = vsub.f32 %v252, %v272
    %v293 = vsub.f32 %v254, %v272
    %v294 = vadd.f32 %v289, 1e-05
    %v295 = vrsqrt.pop %v294
    %v296 = vmul.f32 %v295, %v294
    %v297 = vmul.f32 %v296, %v295
    %v298 = vmul.f32 0.5, %v297
    %v299 = vsub.f32 1.5, %v298
    %v300 = vmul.f32 %v295, %v299
    %vm301 = vweird.f32 %v294
    %vm302 = vweird.f32 %v295
    %vm303 = vmor %vm301, %vm302
    %v304 = vsel %vm303, %v295, %v300
    %v305 = vmul.f32 %v290, %v304
    %v306 = vmul.f32 %v291, %v304
    %v307 = vmul.f32 %v292, %v304
    %v308 = vmul.f32 %v293, %v304
    %v309 = vld [vmem:[%s7] sm:$0x1]
    %v311 = vperm.slane %v309, 0
    %v313 = vmul.f32 %v305, %v311
    %v314 = vmul.f32 %v306, %v311
    %v315 = vmul.f32 %v307, %v311
    %v316 = vmul.f32 %v308, %v311
    %v317 = vld [vmem:[%s8] sm:$0x1]
    %v319 = vperm.slane %v317, 0
    %v321 = vadd.f32 %v313, %v319
    %v322 = vadd.f32 %v314, %v319
    %v323 = vadd.f32 %v315, %v319
    %v324 = vadd.f32 %v316, %v319
    %v325 = vxor.u32 %v321, 2147483648
    %v326 = vxor.u32 %v322, 2147483648
    %v327 = vxor.u32 %v323, 2147483648
    %v328 = vxor.u32 %v324, 2147483648
    %v329 = vmul.f32 %v325, 1.442695
    %v330 = vpow.pop %v329
    %v331 = vmul.f32 %v326, 1.442695
    %v332 = vpow.pop %v331
    %v333 = vmul.f32 %v327, 1.442695
    %v334 = vpow.pop %v333
    %v335 = vmul.f32 %v328, 1.442695
    %v336 = vpow.pop %v335
    %v337 = vadd.f32 %v330, 1.0
    %v338 = vadd.f32 %v332, 1.0
    %v339 = vadd.f32 %v334, 1.0
    %v340 = vadd.f32 %v336, 1.0
    %v341 = vrcp.pop %v337
    %v342 = vmul.f32 %v337, %v341
    %v343 = vsub.f32 1.0, %v342
    %v344 = vmul.f32 %v341, %v343
    %v345 = vadd.f32 %v341, %v344
    %vm346 = vweird.f32 %v337
    %vm347 = vweird.f32 %v341
    %vm348 = vmor %vm346, %vm347
    %v349 = vsel %vm348, %v341, %v345
    %v350 = vand.u32 2147483647, %v337
    %vm351 = vcmp.eq.f32.partialorder %v350, 8.507059e+37
    %v352 = vand.u32 %v337, 2147483648
    %v353 = vor.u32 1.1754944e-38, %v352
    %v354 = vsel %vm351, %v353, %v349
    %v355 = vmul.f32 1.0, %v354
    %v356 = vrcp.pop %v338
    %v357 = vmul.f32 %v338, %v356
    %v358 = vsub.f32 1.0, %v357
    %v359 = vmul.f32 %v356, %v358
    %v360 = vadd.f32 %v356, %v359
    %vm361 = vweird.f32 %v338
    %vm362 = vweird.f32 %v356
    %vm363 = vmor %vm361, %vm362
    %v364 = vsel %vm363, %v356, %v360
    %v365 = vand.u32 2147483647, %v338
    %vm366 = vcmp.eq.f32.partialorder %v365, 8.507059e+37
    %v367 = vand.u32 %v338, 2147483648
    %v368 = vor.u32 1.1754944e-38, %v367
    %v369 = vsel %vm366, %v368, %v364
    %v370 = vmul.f32 1.0, %v369
    %v371 = vrcp.pop %v339
    %v372 = vmul.f32 %v339, %v371
    %v373 = vsub.f32 1.0, %v372
    %v374 = vmul.f32 %v371, %v373
    %v375 = vadd.f32 %v371, %v374
    %vm376 = vweird.f32 %v339
    %vm377 = vweird.f32 %v371
    %vm378 = vmor %vm376, %vm377
    %v379 = vsel %vm378, %v371, %v375
    %v380 = vand.u32 2147483647, %v339
    %vm381 = vcmp.eq.f32.partialorder %v380, 8.507059e+37
    %v382 = vand.u32 %v339, 2147483648
    %v383 = vor.u32 1.1754944e-38, %v382
    %v384 = vsel %vm381, %v383, %v379
    %v385 = vmul.f32 1.0, %v384
    %v386 = vrcp.pop %v340
    %v387 = vmul.f32 %v340, %v386
    %v388 = vsub.f32 1.0, %v387
    %v389 = vmul.f32 %v386, %v388
    %v390 = vadd.f32 %v386, %v389
    %vm391 = vweird.f32 %v340
    %vm392 = vweird.f32 %v386
    %vm393 = vmor %vm391, %vm392
    %v394 = vsel %vm393, %v386, %v390
    %v395 = vand.u32 2147483647, %v340
    %vm396 = vcmp.eq.f32.partialorder %v395, 8.507059e+37
    %v397 = vand.u32 %v340, 2147483648
    %v398 = vor.u32 1.1754944e-38, %v397
    %v399 = vsel %vm396, %v398, %v394
    %v400 = vmul.f32 1.0, %v399
    %v401 = vmax.f32 %v321, 0.0
    %v402 = vmax.f32 %v322, 0.0
    %v403 = vmax.f32 %v323, 0.0
    %v404 = vmax.f32 %v324, 0.0
    %vm405 = vcmp.ne.f32.partialorder %v321, %v321
    %vm406 = vcmp.ne.f32.partialorder %v322, %v322
    %vm407 = vcmp.ne.f32.partialorder %v323, %v323
    %vm408 = vcmp.ne.f32.partialorder %v324, %v324
    %v409 = vadd.f32 %v321, 0.0
    %v410 = vadd.f32 %v322, 0.0
    %v411 = vadd.f32 %v323, 0.0
    %v412 = vadd.f32 %v324, 0.0
    %v413 = vand.u32 2147483647, %v321
    %v414 = vand.u32 2147483647, %v322
    %v415 = vand.u32 2147483647, %v323
    %v416 = vand.u32 2147483647, %v324
    %v417 = vsub.f32 0.0, %v413
    %v418 = vsub.f32 0.0, %v414
    %v419 = vsub.f32 0.0, %v415
    %v420 = vsub.f32 0.0, %v416
    %v421 = vmul.f32 %v417, 1.442695
    %v422 = vpow.pop %v421
    %v423 = vmul.f32 %v418, 1.442695
    %v424 = vpow.pop %v423
    %v425 = vmul.f32 %v419, 1.442695
    %v426 = vpow.pop %v425
    %v427 = vmul.f32 %v420, 1.442695
    %v428 = vpow.pop %v427
    %v429 = vadd.f32 %v422, 1.0
    %v430 = vlog2.pop %v429
    %v431 = vmul.f32 %v430, 0.6931472
    %v432 = vmul.f32 -0.5, %v422
    %v433 = vadd.f32 %v432, 1.0
    %v434 = vmul.f32 %v433, %v422
    %v435 = vand.u32 2147483647, %v422
    %vm436 = vcmp.lt.f32.partialorder %v435, 0.0004427343
    %v437 = vsel %vm436, %v434, %v431
    %v438 = vadd.f32 %v424, 1.0
    %v439 = vlog2.pop %v438
    %v440 = vmul.f32 %v439, 0.6931472
    %v441 = vmul.f32 -0.5, %v424
    %v442 = vadd.f32 %v441, 1.0
    %v443 = vmul.f32 %v442, %v424
    %v444 = vand.u32 2147483647, %v424
    %vm445 = vcmp.lt.f32.partialorder %v444, 0.0004427343
    %v446 = vsel %vm445, %v443, %v440
    %v447 = vadd.f32 %v426, 1.0
    %v448 = vlog2.pop %v447
    %v449 = vmul.f32 %v448, 0.6931472
    %v450 = vmul.f32 -0.5, %v426
    %v451 = vadd.f32 %v450, 1.0
    %v452 = vmul.f32 %v451, %v426
    %v453 = vand.u32 2147483647, %v426
    %vm454 = vcmp.lt.f32.partialorder %v453, 0.0004427343
    %v455 = vsel %vm454, %v452, %v449
    %v456 = vadd.f32 %v428, 1.0
    %v457 = vlog2.pop %v456
    %v458 = vmul.f32 %v457, 0.6931472
    %v459 = vmul.f32 -0.5, %v428
    %v460 = vadd.f32 %v459, 1.0
    %v461 = vmul.f32 %v460, %v428
    %v462 = vand.u32 2147483647, %v428
    %vm463 = vcmp.lt.f32.partialorder %v462, 0.0004427343
    %v464 = vsel %vm463, %v461, %v458
    %v465 = vadd.f32 %v401, %v437
    %v466 = vadd.f32 %v402, %v446
    %v467 = vadd.f32 %v403, %v455
    %v468 = vadd.f32 %v404, %v464
    %v469 = vsel %vm405, %v409, %v465
    %v470 = vsel %vm406, %v410, %v466
    %v471 = vsel %vm407, %v411, %v467
    %v472 = vsel %vm408, %v412, %v468
    %477 = vrot.lane.b32.xlu0 %v469, 64
    %v478 = vpop.permute.xlu0 %477
    %479 = vrot.lane.b32.xlu0 %v470, 64
    %v480 = vpop.permute.xlu0 %479
    %481 = vrot.lane.b32.xlu0 %v471, 64
    %v482 = vpop.permute.xlu0 %481
    %483 = vrot.lane.b32.xlu0 %v472, 64
    %v484 = vpop.permute.xlu0 %483
    %v489 = vmul.f32 %v355, %v478
    %v490 = vmul.f32 %v370, %v480
    %v491 = vmul.f32 %v385, %v482
    %v492 = vmul.f32 %v400, %v484
    %v493 = vlaneseq
    %v494 = vshrl.u32 %v493, 7
    %v495 = vadd.s32 %v494, 8
    %v496 = vld [vmem:[%s4] sm:$0x1]
    %v497 = vperm.slane %v496, 0
    %vm498 = vcmp.eq.s32.totalorder %v494, %v497
    %vm499 = vcmp.eq.s32.totalorder %v495, %v497
    %v500 = vsel %vm498, 1, 0
    %v501 = vsel %vm499, 1, 0
    %v502 = vcvt.s32.f32 %v500
    %v503 = vcvt.s32.f32 %v501
    %v504 = vpack.c.bf16 %v503, %v502
    %v505 = vpack.c.bf16 %v490, %v489
    %v506 = vpack.c.bf16 %v492, %v491
    %v508 = vsel %vm205, %v504, 0
    %510 = vmatpush.bf16.msra.mxu0 0
    %511 = vmatpush.bf16.msra.mxu0 0
    %512 = vmatpush.bf16.msra.mxu0 0
    %513 = vmatpush.bf16.msra.mxu0 0
    %514 = vmatpush.bf16.msra.mxu0 0
    %515 = vmatpush.bf16.msra.mxu0 0
    %516 = vmatpush.bf16.msra.mxu0 %v506
    %517 = vmatpush.bf16.msra.mxu0 %v505
    %518 = vmatmul.bf16.gmra.mxu0 %v508
    %v519 = vpop.f32.mrf.mxu0
    %v520 = vadd.f32 0.0, %v519
    %v521 = vpop.f32.mrf.mxu0
    %v522 = vadd.f32 0.0, %v521
    %523 = vdwg.mxu0
    %v524 = vsel %vm103, %v520, 0.0
    %v525 = vsel %vm103, %v522, 0.0
    %v526 = vadd.f32 %v524, %v525
    %v527 = vrot.slane %v526, 4
    %v528 = vadd.f32 %v526, %v527
    %v529 = vrot.slane %v528, 2
    %v530 = vadd.f32 %v528, %v529
    %v531 = vrot.slane %v530, 1
    %v532 = vadd.f32 %v530, %v531
    %v533 = vrcp.pop 16.0
    %v534 = vmul.f32 16.0, %v533
    %v535 = vsub.f32 1.0, %v534
    %v536 = vmul.f32 %v533, %v535
    %v537 = vadd.f32 %v533, %v536
    %vm538 = vweird.f32 %v533
    %v539 = vsel %vm538, %v533, %v537
    %v540 = vmul.f32 %v532, %v539
    %v541 = vmul.f32 %v520, %v520
    %v542 = vmul.f32 %v522, %v522
    %v543 = vsel %vm103, %v541, 0.0
    %v544 = vsel %vm103, %v542, 0.0
    %v545 = vadd.f32 %v543, %v544
    %v546 = vrot.slane %v545, 4
    %v547 = vadd.f32 %v545, %v546
    %v548 = vrot.slane %v547, 2
    %v549 = vadd.f32 %v547, %v548
    %v550 = vrot.slane %v549, 1
    %v551 = vadd.f32 %v549, %v550
    %v552 = vmul.f32 %v551, %v539
    %v553 = vmul.f32 %v540, %v540
    %v554 = vsub.f32 %v552, %v553
    %v555 = vmax.f32 %v554, 0.0
    %v556 = vsub.f32 %v520, %v540
    %v557 = vsub.f32 %v522, %v540
    %v558 = vadd.f32 %v555, 1e-05
    %v559 = vrsqrt.pop %v558
    %v560 = vmul.f32 %v559, %v558
    %v561 = vmul.f32 %v560, %v559
    %v562 = vmul.f32 0.5, %v561
    %v563 = vsub.f32 1.5, %v562
    %v564 = vmul.f32 %v559, %v563
    %vm565 = vweird.f32 %v558
    %vm566 = vweird.f32 %v559
    %vm567 = vmor %vm565, %vm566
    %v568 = vsel %vm567, %v559, %v564
    %v569 = vmul.f32 %v556, %v568
    %v570 = vmul.f32 %v557, %v568
    %v571 = vld [vmem:[%s9] sm:$0x1]
    %v573 = vperm.slane %v571, 0
    %v575 = vmul.f32 %v569, %v573
    %v576 = vmul.f32 %v570, %v573
    %v577 = vld [vmem:[%s10] sm:$0x1]
    %v579 = vperm.slane %v577, 0
    %v581 = vadd.f32 %v575, %v579
    %v582 = vadd.f32 %v576, %v579
    %v583 = vadd.f32 %v72, %v581
    %v584 = vadd.f32 %v73, %v582
    %v585 = vmax.f32 %v583, 0.0
    %v586 = vmax.f32 %v584, 0.0
    %vm587 = vcmp.ne.f32.partialorder %v583, %v583
    %vm588 = vcmp.ne.f32.partialorder %v584, %v584
    %v589 = vadd.f32 %v583, 0.0
    %v590 = vadd.f32 %v584, 0.0
    %v591 = vand.u32 2147483647, %v583
    %v592 = vand.u32 2147483647, %v584
    %v593 = vsub.f32 0.0, %v591
    %v594 = vsub.f32 0.0, %v592
    %v595 = vmul.f32 %v593, 1.442695
    %v596 = vpow.pop %v595
    %v597 = vmul.f32 %v594, 1.442695
    %v598 = vpow.pop %v597
    %v599 = vadd.f32 %v596, 1.0
    %v600 = vlog2.pop %v599
    %v601 = vmul.f32 %v600, 0.6931472
    %v602 = vmul.f32 -0.5, %v596
    %v603 = vadd.f32 %v602, 1.0
    %v604 = vmul.f32 %v603, %v596
    %v605 = vand.u32 2147483647, %v596
    %vm606 = vcmp.lt.f32.partialorder %v605, 0.0004427343
    %v607 = vsel %vm606, %v604, %v601
    %v608 = vadd.f32 %v598, 1.0
    %v609 = vlog2.pop %v608
    %v610 = vmul.f32 %v609, 0.6931472
    %v611 = vmul.f32 -0.5, %v598
    %v612 = vadd.f32 %v611, 1.0
    %v613 = vmul.f32 %v612, %v598
    %v614 = vand.u32 2147483647, %v598
    %vm615 = vcmp.lt.f32.partialorder %v614, 0.0004427343
    %v616 = vsel %vm615, %v613, %v610
    %v617 = vadd.f32 %v585, %v607
    %v618 = vadd.f32 %v586, %v616
    %v619 = vsel %vm587, %v589, %v617
    %v620 = vsel %vm588, %v590, %v618
    %621 = vst.msk [vmem:[#allocation7] sm:$0xff] %vm103, %v619
    %622 = vst.msk [vmem:[#allocation7 + $0x8] sm:$0xff] %vm103, %v620
    // Predicated region
    $region54: #{tpu_custom_call.1} parent=1 // pred_check
      _
    $region55: #{tpu_custom_call.1} parent=1 // pred_check_branch
      %624 = sbr.rel (0) target = $region57
    $region56: #{tpu_custom_call.1} parent=1 // pred_region
      %626 = vsyncadd [#allocation4], 0
      %s627 = sshll.u32 [#allocation7], 4
      %s628 = int_to_ptr.vmem [resolvable:$true] %s627
      %s629 = sshll.u32 %s11, 4
      %s630 = int_to_ptr.hbm [resolvable:$true] %s629
      %635 = dma.vmem_to_hbm [thread:$0]  %s628, 256, %s630, [#allocation4], 128, 128, 8
    $region57: #{tpu_custom_call.1} parent=1 // pred_fallthru
      _
    // Predicated region
    $region58: #{tpu_custom_call.1} parent=1 // pred_check
      _
    $region59: #{tpu_custom_call.1} parent=1 // pred_check_branch
      %637 = sbr.rel (0) target = $region61
    $region60: #{tpu_custom_call.1} parent=1 // pred_region
      %639 = dma.done [#allocation4], 256
    $region61: #{tpu_custom_call.1} parent=1 // pred_fallthru
      _
    %640 = vsyncpa [#allocation3], 1
    %641 = vsyncpa [#allocation6], 1
    %642 = vsyncpa [#allocation4], 1

</llo_original>
